<compile_context>
chip_gen: v7x
topology: tpu7x:2x2x1
jax: 0.10.0
libtpu: 0.0.40
codegen_flags: <defaults>
</compile_context>

<pallas_src>
import functools

import jax
import jax.numpy as jnp
from jax.experimental import pallas as pl
from jax.experimental.pallas import tpu as pltpu


def _upconv_kernel(x_ref, w_ref, b_ref, o_ref, slab_ref, *, H, W, Cin, Nb):
    """One grid step processes Nb batch elements.

    x_ref   : (3, Nb, Cin, (H+2)*W) bf16  ds-pre-shifted, H-padded, W-flattened input
    w_ref   : (4*Cout, 9*Cin)       bf16  combined sub-pixel weights (rows = (a, b, cout))
    b_ref   : (4*Cout, 1)           f32   bias tiled over the 4 sub-pixel phases
    o_ref   : (Nb, 4*Cout, H*W)     f32   output, lane axis = spatial index i*W + j
    slab_ref: (9*Cin, Nb*H*W)       bf16  im2col scratch, lane axis = (n, i, j)
    """
    HW = H * W

    # im2col: 9*Nb lane-dense copies.  Each writes Cin full-lane (HW-wide) rows into the
    # slab; the source is a contiguous length-HW lane slice at static offset dr*W.
    for dr in range(3):
        for ds in range(3):
            k = dr * 3 + ds
            for n in range(Nb):
                slab_ref[k * Cin:(k + 1) * Cin, n * HW:(n + 1) * HW] = (
                    x_ref[ds, n, :, dr * W:dr * W + HW])

    # Single MXU matmul: (4*Cout, 9*Cin) x (9*Cin, Nb*H*W), bf16 operands, f32 accumulate.
    acc = jnp.dot(w_ref[...], slab_ref[...], preferred_element_type=jnp.float32)
    acc = acc + b_ref[...]                       # f32 VPU add (v5e-safe, no bf16 VALU)

    # Dense, 128-aligned lane-range stores (n*HW is a multiple of 256).
    for n in range(Nb):
        o_ref[n] = acc[:, n * HW:(n + 1) * HW].astype(o_ref.dtype)


def upconv_forward(x_nchw, weight, bias):
    """Forward of UpConv (scale_factor=2 nearest + Conv2d(3x3, stride=1, pad=1)).

    x_nchw : (N, Cin, H, W)      float32
    weight : (Cout, Cin, 3, 3)   float32  (PyTorch Conv2d layout)
    bias   : (Cout,)             float32
    returns: (N, Cout, 2H, 2W)   float32
    """
    N, Cin, H, W = x_nchw.shape
    Cout = weight.shape[0]
    C4 = 4 * Cout               # (phase_a, phase_b, cout) packed on the sublane axis
    HW = H * W
    K = 9 * Cin
    Nb = 2 if N % 2 == 0 else 1  # batch elements per grid step
    # Note: HW % 128 == 0 and C4 % 8 == 0 keep every store unmasked; other shapes still
    # compile (full-dim blocks) but would use partially masked stores.

    # --- input glue: cast to bf16 FIRST, pad H/W by 1, pre-shift along W (3 copies),
    #     flatten (H+2, W) -> (H+2)*W so every in-kernel 3x3 window is a contiguous slice.
    xb = x_nchw.astype(jnp.bfloat16)
    xp = jnp.pad(xb, ((0, 0), (0, 0), (1, 1), (1, 1)))           # (N, Cin, H+2, W+2)
    x_prep = jnp.stack([xp[:, :, :, ds:ds + W] for ds in range(3)], axis=0)
    x_prep = x_prep.reshape(3, N, Cin, (H + 2) * W)              # (3, N, Cin, (H+2)*W)

    # --- combined sub-pixel weights ------------------------------------------------------
    # y[2i+a, 2j+b, co] = bias[co] + sum_{dr,ds,ci} xp[i+dr, j+ds, ci] * Wfull[dr,ds,ci,a,b,co]
    # with Wfull[dr,ds,ci,a,b,co] = sum_{kh,kw} S[a,dr,kh] * S[b,ds,kw] * w[co,ci,kh,kw].
    S = jnp.array([[[1., 0., 0.], [0., 1., 1.], [0., 0., 0.]],
                   [[0., 0., 0.], [1., 1., 0.], [0., 0., 1.]]], dtype=jnp.float32)
    wf = jnp.einsum('adk,bsl,oikl->abodsi', S, S, weight.astype(jnp.float32))
    w2t = wf.reshape(C4, K).astype(jnp.bfloat16)                 # (4*Cout, 9*Cin)
    b2 = jnp.tile(bias.astype(jnp.float32), 4).reshape(C4, 1)    # (4*Cout, 1)

    kernel = functools.partial(_upconv_kernel, H=H, W=W, Cin=Cin, Nb=Nb)

    out = pl.pallas_call(
        kernel,
        out_shape=jax.ShapeDtypeStruct((N, C4, HW), jnp.float32),
        grid_spec=pltpu.PrefetchScalarGridSpec(
            num_scalar_prefetch=0,
            grid=(N // Nb,),
            in_specs=[
                pl.BlockSpec((3, Nb, Cin, (H + 2) * W), lambda n: (0, n, 0, 0)),
                pl.BlockSpec((C4, K), lambda n: (0, 0)),     # resident across grid steps
                pl.BlockSpec((C4, 1), lambda n: (0, 0)),     # resident across grid steps
            ],
            out_specs=pl.BlockSpec((Nb, C4, HW), lambda n: (n, 0, 0)),
            scratch_shapes=[pltpu.VMEM((K, Nb * HW), jnp.bfloat16)],
        ),
        compiler_params=pltpu.CompilerParams(
            dimension_semantics=("parallel",)),
    )(x_prep, w2t, b2)

    # --- output layout plumbing (wrapper side, fused by XLA) -----------------------------
    # (N, 4*Cout, H*W) -> (N, 2, 2, Cout, H, W) -> (N, Cout, H, 2, W, 2) -> NCHW 2x res.
    out = out.reshape(N, 2, 2, Cout, H, W)
    out = jnp.transpose(out, (0, 3, 4, 1, 5, 2)).reshape(N, Cout, 2 * H, 2 * W)
    return out


def _reference(x_nchw, weight, bias):
    """Pure-JAX reference: nearest 2x upsample + conv2d(pad=1), high precision."""
    x = jnp.repeat(jnp.repeat(x_nchw, 2, axis=2), 2, axis=3)
    out = jax.lax.conv_general_dilated(
        x, weight, window_strides=(1, 1), padding=((1, 1), (1, 1)),
        dimension_numbers=("NCHW", "OIHW", "NCHW"),
        precision=jax.lax.Precision.HIGHEST)
    return out + bias[None, :, None, None]


if __name__ == "__main__":
    key = jax.random.PRNGKey(0)
    k_x, k_w, k_b = jax.random.split(key, 3)

    N, Cin, H, W = 2, 4, 16, 16
    Cout = 8

    x = jax.random.normal(k_x, (N, Cin, H, W), dtype=jnp.float32)
    # Deterministic synthetic Conv2d params (PyTorch shapes: [outc, inc, 3, 3], [outc]).
    weight = jax.random.normal(k_w, (Cout, Cin, 3, 3), dtype=jnp.float32) * 0.1
    bias = jax.random.normal(k_b, (Cout,), dtype=jnp.float32) * 0.1

    upconv = jax.jit(upconv_forward)
    out = jax.block_until_ready(upconv(x, weight, bias))

    # Kernel feeds bf16 operands to the MXU (f32 accumulation), so compare against a
    # reference built from bf16-rounded activations with a loosened tolerance.
    x_r = x.astype(jnp.bfloat16).astype(jnp.float32)
    ref = jax.block_until_ready(_reference(x_r, weight, bias))

    assert out.shape == (N, Cout, 2 * H, 2 * W), out.shape
    max_err = float(jnp.max(jnp.abs(out - ref)))
    assert jnp.allclose(out, ref, atol=5e-2, rtol=5e-2), f"mismatch, max_err={max_err}"

    print("KERNEL_OK")
</pallas_src>

<mosaic_0001>
module attributes {stable_mosaic.version = 11 : i64} {
  func.func @_upconv_kernel(%arg0: i32, %arg1: memref<3x2x4x288xbf16, #tpu.memory_space<vmem>>, %arg2: memref<32x36xbf16, #tpu.memory_space<vmem>>, %arg3: memref<32x1xf32, #tpu.memory_space<vmem>>, %arg4: memref<2x32x256xf32, #tpu.memory_space<vmem>>, %arg5: memref<36x512xbf16, #tpu.memory_space<vmem>>) attributes {dimension_semantics = [#tpu.dimension_semantics<parallel>], iteration_bounds = array<i64: 1>, scalar_prefetch = 0 : i64, scratch_operands = 1 : i64, tpu.core_type = #tpu.core_type<tc>, window_params = [{transform_indices = @transform_0, window_bounds = array<i64: 3, 2, 4, 288>}, {pipeline_mode = #tpu.pipeline_mode<synchronous>, transform_indices = @transform_1, window_bounds = array<i64: 32, 36>}, {pipeline_mode = #tpu.pipeline_mode<synchronous>, transform_indices = @transform_2, window_bounds = array<i64: 32, 1>}, {transform_indices = @transform_3, window_bounds = array<i64: 2, 32, 256>}]} {
    %c0 = arith.constant 0 : index
    %c0_0 = arith.constant 0 : index
    %c0_1 = arith.constant 0 : index
    %c0_2 = arith.constant 0 : index
    %0 = vector.load %arg1[%c0, %c0_0, %c0_1, %c0_2] : memref<3x2x4x288xbf16, #tpu.memory_space<vmem>>, vector<1x1x4x256xbf16>
    %1 = vector.shape_cast %0 : vector<1x1x4x256xbf16> to vector<4x256xbf16>
    %c0_3 = arith.constant 0 : index
    %c0_4 = arith.constant 0 : index
    %2 = vector.load %arg5[%c0_3, %c0_4] : memref<36x512xbf16, #tpu.memory_space<vmem>>, vector<4x256xbf16>
    tpu.vector_store %arg5[%c0_3, %c0_4], %1 {strides = array<i32>} : memref<36x512xbf16, #tpu.memory_space<vmem>>, vector<4x256xbf16>,
    %c0_5 = arith.constant 0 : index
    %c1 = arith.constant 1 : index
    %c0_6 = arith.constant 0 : index
    %c0_7 = arith.constant 0 : index
    %3 = vector.load %arg1[%c0_5, %c1, %c0_6, %c0_7] : memref<3x2x4x288xbf16, #tpu.memory_space<vmem>>, vector<1x1x4x256xbf16>
    %4 = vector.shape_cast %3 : vector<1x1x4x256xbf16> to vector<4x256xbf16>
    %c0_8 = arith.constant 0 : index
    %c256 = arith.constant 256 : index
    %5 = vector.load %arg5[%c0_8, %c256] : memref<36x512xbf16, #tpu.memory_space<vmem>>, vector<4x256xbf16>
    tpu.vector_store %arg5[%c0_8, %c256], %4 {strides = array<i32>} : memref<36x512xbf16, #tpu.memory_space<vmem>>, vector<4x256xbf16>,
    %c1_9 = arith.constant 1 : index
    %c0_10 = arith.constant 0 : index
    %c0_11 = arith.constant 0 : index
    %c0_12 = arith.constant 0 : index
    %6 = vector.load %arg1[%c1_9, %c0_10, %c0_11, %c0_12] : memref<3x2x4x288xbf16, #tpu.memory_space<vmem>>, vector<1x1x4x256xbf16>
    %7 = vector.shape_cast %6 : vector<1x1x4x256xbf16> to vector<4x256xbf16>
    %c4 = arith.constant 4 : index
    %c0_13 = arith.constant 0 : index
    %8 = vector.load %arg5[%c4, %c0_13] : memref<36x512xbf16, #tpu.memory_space<vmem>>, vector<4x256xbf16>
    tpu.vector_store %arg5[%c4, %c0_13], %7 {strides = array<i32>} : memref<36x512xbf16, #tpu.memory_space<vmem>>, vector<4x256xbf16>,
    %c1_14 = arith.constant 1 : index
    %c1_15 = arith.constant 1 : index
    %c0_16 = arith.constant 0 : index
    %c0_17 = arith.constant 0 : index
    %9 = vector.load %arg1[%c1_14, %c1_15, %c0_16, %c0_17] : memref<3x2x4x288xbf16, #tpu.memory_space<vmem>>, vector<1x1x4x256xbf16>
    %10 = vector.shape_cast %9 : vector<1x1x4x256xbf16> to vector<4x256xbf16>
    %c4_18 = arith.constant 4 : index
    %c256_19 = arith.constant 256 : index
    %11 = vector.load %arg5[%c4_18, %c256_19] : memref<36x512xbf16, #tpu.memory_space<vmem>>, vector<4x256xbf16>
    tpu.vector_store %arg5[%c4_18, %c256_19], %10 {strides = array<i32>} : memref<36x512xbf16, #tpu.memory_space<vmem>>, vector<4x256xbf16>,
    %c2 = arith.constant 2 : index
    %c0_20 = arith.constant 0 : index
    %c0_21 = arith.constant 0 : index
    %c0_22 = arith.constant 0 : index
    %12 = vector.load %arg1[%c2, %c0_20, %c0_21, %c0_22] : memref<3x2x4x288xbf16, #tpu.memory_space<vmem>>, vector<1x1x4x256xbf16>
    %13 = vector.shape_cast %12 : vector<1x1x4x256xbf16> to vector<4x256xbf16>
    %c8 = arith.constant 8 : index
    %c0_23 = arith.constant 0 : index
    %14 = vector.load %arg5[%c8, %c0_23] : memref<36x512xbf16, #tpu.memory_space<vmem>>, vector<4x256xbf16>
    tpu.vector_store %arg5[%c8, %c0_23], %13 {strides = array<i32>} : memref<36x512xbf16, #tpu.memory_space<vmem>>, vector<4x256xbf16>,
    %c2_24 = arith.constant 2 : index
    %c1_25 = arith.constant 1 : index
    %c0_26 = arith.constant 0 : index
    %c0_27 = arith.constant 0 : index
    %15 = vector.load %arg1[%c2_24, %c1_25, %c0_26, %c0_27] : memref<3x2x4x288xbf16, #tpu.memory_space<vmem>>, vector<1x1x4x256xbf16>
    %16 = vector.shape_cast %15 : vector<1x1x4x256xbf16> to vector<4x256xbf16>
    %c8_28 = arith.constant 8 : index
    %c256_29 = arith.constant 256 : index
    %17 = vector.load %arg5[%c8_28, %c256_29] : memref<36x512xbf16, #tpu.memory_space<vmem>>, vector<4x256xbf16>
    tpu.vector_store %arg5[%c8_28, %c256_29], %16 {strides = array<i32>} : memref<36x512xbf16, #tpu.memory_space<vmem>>, vector<4x256xbf16>,
    %c0_30 = arith.constant 0 : index
    %c0_31 = arith.constant 0 : index
    %c0_32 = arith.constant 0 : index
    %c16 = arith.constant 16 : index
    %18 = vector.load %arg1[%c0_30, %c0_31, %c0_32, %c16] : memref<3x2x4x288xbf16, #tpu.memory_space<vmem>>, vector<1x1x4x256xbf16>
    %19 = vector.shape_cast %18 : vector<1x1x4x256xbf16> to vector<4x256xbf16>
    %c12 = arith.constant 12 : index
    %c0_33 = arith.constant 0 : index
    %20 = vector.load %arg5[%c12, %c0_33] : memref<36x512xbf16, #tpu.memory_space<vmem>>, vector<4x256xbf16>
    tpu.vector_store %arg5[%c12, %c0_33], %19 {strides = array<i32>} : memref<36x512xbf16, #tpu.memory_space<vmem>>, vector<4x256xbf16>,
    %c0_34 = arith.constant 0 : index
    %c1_35 = arith.constant 1 : index
    %c0_36 = arith.constant 0 : index
    %c16_37 = arith.constant 16 : index
    %21 = vector.load %arg1[%c0_34, %c1_35, %c0_36, %c16_37] : memref<3x2x4x288xbf16, #tpu.memory_space<vmem>>, vector<1x1x4x256xbf16>
    %22 = vector.shape_cast %21 : vector<1x1x4x256xbf16> to vector<4x256xbf16>
    %c12_38 = arith.constant 12 : index
    %c256_39 = arith.constant 256 : index
    %23 = vector.load %arg5[%c12_38, %c256_39] : memref<36x512xbf16, #tpu.memory_space<vmem>>, vector<4x256xbf16>
    tpu.vector_store %arg5[%c12_38, %c256_39], %22 {strides = array<i32>} : memref<36x512xbf16, #tpu.memory_space<vmem>>, vector<4x256xbf16>,
    %c1_40 = arith.constant 1 : index
    %c0_41 = arith.constant 0 : index
    %c0_42 = arith.constant 0 : index
    %c16_43 = arith.constant 16 : index
    %24 = vector.load %arg1[%c1_40, %c0_41, %c0_42, %c16_43] : memref<3x2x4x288xbf16, #tpu.memory_space<vmem>>, vector<1x1x4x256xbf16>
    %25 = vector.shape_cast %24 : vector<1x1x4x256xbf16> to vector<4x256xbf16>
    %c16_44 = arith.constant 16 : index
    %c0_45 = arith.constant 0 : index
    %26 = vector.load %arg5[%c16_44, %c0_45] : memref<36x512xbf16, #tpu.memory_space<vmem>>, vector<4x256xbf16>
    tpu.vector_store %arg5[%c16_44, %c0_45], %25 {strides = array<i32>} : memref<36x512xbf16, #tpu.memory_space<vmem>>, vector<4x256xbf16>,
    %c1_46 = arith.constant 1 : index
    %c1_47 = arith.constant 1 : index
    %c0_48 = arith.constant 0 : index
    %c16_49 = arith.constant 16 : index
    %27 = vector.load %arg1[%c1_46, %c1_47, %c0_48, %c16_49] : memref<3x2x4x288xbf16, #tpu.memory_space<vmem>>, vector<1x1x4x256xbf16>
    %28 = vector.shape_cast %27 : vector<1x1x4x256xbf16> to vector<4x256xbf16>
    %c16_50 = arith.constant 16 : index
    %c256_51 = arith.constant 256 : index
    %29 = vector.load %arg5[%c16_50, %c256_51] : memref<36x512xbf16, #tpu.memory_space<vmem>>, vector<4x256xbf16>
    tpu.vector_store %arg5[%c16_50, %c256_51], %28 {strides = array<i32>} : memref<36x512xbf16, #tpu.memory_space<vmem>>, vector<4x256xbf16>,
    %c2_52 = arith.constant 2 : index
    %c0_53 = arith.constant 0 : index
    %c0_54 = arith.constant 0 : index
    %c16_55 = arith.constant 16 : index
    %30 = vector.load %arg1[%c2_52, %c0_53, %c0_54, %c16_55] : memref<3x2x4x288xbf16, #tpu.memory_space<vmem>>, vector<1x1x4x256xbf16>
    %31 = vector.shape_cast %30 : vector<1x1x4x256xbf16> to vector<4x256xbf16>
    %c20 = arith.constant 20 : index
    %c0_56 = arith.constant 0 : index
    %32 = vector.load %arg5[%c20, %c0_56] : memref<36x512xbf16, #tpu.memory_space<vmem>>, vector<4x256xbf16>
    tpu.vector_store %arg5[%c20, %c0_56], %31 {strides = array<i32>} : memref<36x512xbf16, #tpu.memory_space<vmem>>, vector<4x256xbf16>,
    %c2_57 = arith.constant 2 : index
    %c1_58 = arith.constant 1 : index
    %c0_59 = arith.constant 0 : index
    %c16_60 = arith.constant 16 : index
    %33 = vector.load %arg1[%c2_57, %c1_58, %c0_59, %c16_60] : memref<3x2x4x288xbf16, #tpu.memory_space<vmem>>, vector<1x1x4x256xbf16>
    %34 = vector.shape_cast %33 : vector<1x1x4x256xbf16> to vector<4x256xbf16>
    %c20_61 = arith.constant 20 : index
    %c256_62 = arith.constant 256 : index
    %35 = vector.load %arg5[%c20_61, %c256_62] : memref<36x512xbf16, #tpu.memory_space<vmem>>, vector<4x256xbf16>
    tpu.vector_store %arg5[%c20_61, %c256_62], %34 {strides = array<i32>} : memref<36x512xbf16, #tpu.memory_space<vmem>>, vector<4x256xbf16>,
    %c0_63 = arith.constant 0 : index
    %c0_64 = arith.constant 0 : index
    %c0_65 = arith.constant 0 : index
    %c32 = arith.constant 32 : index
    %36 = vector.load %arg1[%c0_63, %c0_64, %c0_65, %c32] : memref<3x2x4x288xbf16, #tpu.memory_space<vmem>>, vector<1x1x4x256xbf16>
    %37 = vector.shape_cast %36 : vector<1x1x4x256xbf16> to vector<4x256xbf16>
    %c24 = arith.constant 24 : index
    %c0_66 = arith.constant 0 : index
    %38 = vector.load %arg5[%c24, %c0_66] : memref<36x512xbf16, #tpu.memory_space<vmem>>, vector<4x256xbf16>
    tpu.vector_store %arg5[%c24, %c0_66], %37 {strides = array<i32>} : memref<36x512xbf16, #tpu.memory_space<vmem>>, vector<4x256xbf16>,
    %c0_67 = arith.constant 0 : index
    %c1_68 = arith.constant 1 : index
    %c0_69 = arith.constant 0 : index
    %c32_70 = arith.constant 32 : index
    %39 = vector.load %arg1[%c0_67, %c1_68, %c0_69, %c32_70] : memref<3x2x4x288xbf16, #tpu.memory_space<vmem>>, vector<1x1x4x256xbf16>
    %40 = vector.shape_cast %39 : vector<1x1x4x256xbf16> to vector<4x256xbf16>
    %c24_71 = arith.constant 24 : index
    %c256_72 = arith.constant 256 : index
    %41 = vector.load %arg5[%c24_71, %c256_72] : memref<36x512xbf16, #tpu.memory_space<vmem>>, vector<4x256xbf16>
    tpu.vector_store %arg5[%c24_71, %c256_72], %40 {strides = array<i32>} : memref<36x512xbf16, #tpu.memory_space<vmem>>, vector<4x256xbf16>,
    %c1_73 = arith.constant 1 : index
    %c0_74 = arith.constant 0 : index
    %c0_75 = arith.constant 0 : index
    %c32_76 = arith.constant 32 : index
    %42 = vector.load %arg1[%c1_73, %c0_74, %c0_75, %c32_76] : memref<3x2x4x288xbf16, #tpu.memory_space<vmem>>, vector<1x1x4x256xbf16>
    %43 = vector.shape_cast %42 : vector<1x1x4x256xbf16> to vector<4x256xbf16>
    %c28 = arith.constant 28 : index
    %c0_77 = arith.constant 0 : index
    %44 = vector.load %arg5[%c28, %c0_77] : memref<36x512xbf16, #tpu.memory_space<vmem>>, vector<4x256xbf16>
    tpu.vector_store %arg5[%c28, %c0_77], %43 {strides = array<i32>} : memref<36x512xbf16, #tpu.memory_space<vmem>>, vector<4x256xbf16>,
    %c1_78 = arith.constant 1 : index
    %c1_79 = arith.constant 1 : index
    %c0_80 = arith.constant 0 : index
    %c32_81 = arith.constant 32 : index
    %45 = vector.load %arg1[%c1_78, %c1_79, %c0_80, %c32_81] : memref<3x2x4x288xbf16, #tpu.memory_space<vmem>>, vector<1x1x4x256xbf16>
    %46 = vector.shape_cast %45 : vector<1x1x4x256xbf16> to vector<4x256xbf16>
    %c28_82 = arith.constant 28 : index
    %c256_83 = arith.constant 256 : index
    %47 = vector.load %arg5[%c28_82, %c256_83] : memref<36x512xbf16, #tpu.memory_space<vmem>>, vector<4x256xbf16>
    tpu.vector_store %arg5[%c28_82, %c256_83], %46 {strides = array<i32>} : memref<36x512xbf16, #tpu.memory_space<vmem>>, vector<4x256xbf16>,
    %c2_84 = arith.constant 2 : index
    %c0_85 = arith.constant 0 : index
    %c0_86 = arith.constant 0 : index
    %c32_87 = arith.constant 32 : index
    %48 = vector.load %arg1[%c2_84, %c0_85, %c0_86, %c32_87] : memref<3x2x4x288xbf16, #tpu.memory_space<vmem>>, vector<1x1x4x256xbf16>
    %49 = vector.shape_cast %48 : vector<1x1x4x256xbf16> to vector<4x256xbf16>
    %c32_88 = arith.constant 32 : index
    %c0_89 = arith.constant 0 : index
    %50 = vector.load %arg5[%c32_88, %c0_89] : memref<36x512xbf16, #tpu.memory_space<vmem>>, vector<4x256xbf16>
    tpu.vector_store %arg5[%c32_88, %c0_89], %49 {strides = array<i32>} : memref<36x512xbf16, #tpu.memory_space<vmem>>, vector<4x256xbf16>,
    %c2_90 = arith.constant 2 : index
    %c1_91 = arith.constant 1 : index
    %c0_92 = arith.constant 0 : index
    %c32_93 = arith.constant 32 : index
    %51 = vector.load %arg1[%c2_90, %c1_91, %c0_92, %c32_93] : memref<3x2x4x288xbf16, #tpu.memory_space<vmem>>, vector<1x1x4x256xbf16>
    %52 = vector.shape_cast %51 : vector<1x1x4x256xbf16> to vector<4x256xbf16>
    %c32_94 = arith.constant 32 : index
    %c256_95 = arith.constant 256 : index
    %53 = vector.load %arg5[%c32_94, %c256_95] : memref<36x512xbf16, #tpu.memory_space<vmem>>, vector<4x256xbf16>
    tpu.vector_store %arg5[%c32_94, %c256_95], %52 {strides = array<i32>} : memref<36x512xbf16, #tpu.memory_space<vmem>>, vector<4x256xbf16>,
    %c0_96 = arith.constant 0 : index
    %c0_97 = arith.constant 0 : index
    %54 = vector.load %arg2[%c0_96, %c0_97] : memref<32x36xbf16, #tpu.memory_space<vmem>>, vector<32x36xbf16>
    %c0_98 = arith.constant 0 : index
    %c0_99 = arith.constant 0 : index
    %55 = vector.load %arg5[%c0_98, %c0_99] : memref<36x512xbf16, #tpu.memory_space<vmem>>, vector<36x512xbf16>
    %cst = arith.constant dense<0.000000e+00> : vector<32x512xf32>
    %56 = tpu.matmul %54, %55, %cst {dimension_numbers = #tpu.dot_dimension_numbers<[1], [0], [0], [1], [0, 0, 1, 1], [], []>} : vector<32x36xbf16>, vector<36x512xbf16>, vector<32x512xf32> -> vector<32x512xf32>
    %c0_100 = arith.constant 0 : index
    %c0_101 = arith.constant 0 : index
    %57 = vector.load %arg3[%c0_100, %c0_101] : memref<32x1xf32, #tpu.memory_space<vmem>>, vector<32x1xf32>
    %58 = vector.broadcast %57 : vector<32x1xf32> to vector<32x512xf32>
    %59 = arith.addf %56, %58 : vector<32x512xf32>
    %60 = vector.extract_strided_slice %59 {offsets = [0, 0], sizes = [32, 256], strides = [1, 1]} : vector<32x512xf32> to vector<32x256xf32>
    %c0_102 = arith.constant 0 : index
    %c0_103 = arith.constant 0 : index
    %c0_104 = arith.constant 0 : index
    %61 = vector.load %arg4[%c0_102, %c0_103, %c0_104] : memref<2x32x256xf32, #tpu.memory_space<vmem>>, vector<1x32x256xf32>
    %62 = vector.shape_cast %61 : vector<1x32x256xf32> to vector<32x256xf32>
    %63 = vector.shape_cast %60 : vector<32x256xf32> to vector<1x32x256xf32>
    tpu.vector_store %arg4[%c0_102, %c0_103, %c0_104], %63 {strides = array<i32>} : memref<2x32x256xf32, #tpu.memory_space<vmem>>, vector<1x32x256xf32>,
    %64 = vector.extract_strided_slice %59 {offsets = [0, 256], sizes = [32, 256], strides = [1, 1]} : vector<32x512xf32> to vector<32x256xf32>
    %c1_105 = arith.constant 1 : index
    %c0_106 = arith.constant 0 : index
    %c0_107 = arith.constant 0 : index
    %65 = vector.load %arg4[%c1_105, %c0_106, %c0_107] : memref<2x32x256xf32, #tpu.memory_space<vmem>>, vector<1x32x256xf32>
    %66 = vector.shape_cast %65 : vector<1x32x256xf32> to vector<32x256xf32>
    %67 = vector.shape_cast %64 : vector<32x256xf32> to vector<1x32x256xf32>
    tpu.vector_store %arg4[%c1_105, %c0_106, %c0_107], %67 {strides = array<i32>} : memref<2x32x256xf32, #tpu.memory_space<vmem>>, vector<1x32x256xf32>,
    return
  }
  func.func @transform_0(%arg0: i32) -> (i32, i32, i32, i32) {
    %c0_i32 = arith.constant 0 : i32
    %c0_i32_0 = arith.constant 0 : i32
    %c0_i32_1 = arith.constant 0 : i32
    %c0_i32_2 = arith.constant 0 : i32
    return %c0_i32, %arg0, %c0_i32_0, %c0_i32_1 : i32, i32, i32, i32
  }
  func.func @transform_1(%arg0: i32) -> (i32, i32) {
    %c0_i32 = arith.constant 0 : i32
    %c0_i32_0 = arith.constant 0 : i32
    %c0_i32_1 = arith.constant 0 : i32
    return %c0_i32, %c0_i32_0 : i32, i32
  }
  func.func @transform_2(%arg0: i32) -> (i32, i32) {
    %c0_i32 = arith.constant 0 : i32
    %c0_i32_0 = arith.constant 0 : i32
    %c0_i32_1 = arith.constant 0 : i32
    return %c0_i32, %c0_i32_0 : i32, i32
  }
  func.func @transform_3(%arg0: i32) -> (i32, i32, i32) {
    %c0_i32 = arith.constant 0 : i32
    %c0_i32_0 = arith.constant 0 : i32
    %c0_i32_1 = arith.constant 0 : i32
    return %arg0, %c0_i32, %c0_i32_0 : i32, i32, i32
  }
}

</mosaic_0001>

<llo_original>
// kernel: tile.0
$region0: #{tile.0}
  %s0 = inlined_call_operand.vmem [shape: f32[4,8], index: 0, kind: input, shape index: {}]
  %s1 = inlined_call_operand.vmem [shape: f32[32,1], index: 1, kind: output, shape index: {}]
  $region1: #{tile.0} parent=0
    #allocation0 [shape = 'u8[4096]{0}', space=vmem, size = 0x1000, scoped, tag = 'scoped mem for input reshape']
    %s3 = sshllo.u32 0, 4
    %v4 = vld [vmem:[%s0] sm:%s3]
    %5 = vst [vmem:[#allocation0] sm:%s3] %v4
    %v6 = vld [vmem:[#allocation0] sm:$0xf]
    %vm7 = vcmask 7168
    %8 = vst.msk [vmem:[%s1] ss:$8 sm:$0xf] %vm7, %v6
    %v9 = vld [vmem:[#allocation0] sm:$0xf]
    %10 = vrot.lane.b32.xlu0 %v9, 127
    %v11 = vpop.permute.xlu0 %10
    %vm12 = vcmask 7168
    %s13 = scalar_lea.vmem %s1, 1
    %14 = vst.msk [vmem:[%s13] ss:$8 sm:$0xf] %vm12, %v11
    %v15 = vld [vmem:[#allocation0] sm:$0xf]
    %16 = vrot.lane.b32.xlu0 %v15, 126
    %v17 = vpop.permute.xlu0 %16
    %vm18 = vcmask 7168
    %s19 = scalar_lea.vmem %s1, 2
    %20 = vst.msk [vmem:[%s19] ss:$8 sm:$0xf] %vm18, %v17
    %v21 = vld [vmem:[#allocation0] sm:$0xf]
    %22 = vrot.lane.b32.xlu0 %v21, 125
    %v23 = vpop.permute.xlu0 %22
    %vm24 = vcmask 7168
    %s25 = scalar_lea.vmem %s1, 3
    %26 = vst.msk [vmem:[%s25] ss:$8 sm:$0xf] %vm24, %v23
    %v27 = vld [vmem:[#allocation0] sm:$0xf]
    %28 = vrot.lane.b32.xlu0 %v27, 124
    %v29 = vpop.permute.xlu0 %28
    %vm30 = vcmask 7168
    %s31 = scalar_lea.vmem %s1, 4
    %32 = vst.msk [vmem:[%s31] ss:$8 sm:$0xf] %vm30, %v29
    %v33 = vld [vmem:[#allocation0] sm:$0xf]
    %34 = vrot.lane.b32.xlu0 %v33, 123
    %v35 = vpop.permute.xlu0 %34
    %vm36 = vcmask 7168
    %s37 = scalar_lea.vmem %s1, 5
    %38 = vst.msk [vmem:[%s37] ss:$8 sm:$0xf] %vm36, %v35
    %v39 = vld [vmem:[#allocation0] sm:$0xf]
    %40 = vrot.lane.b32.xlu0 %v39, 122
    %v41 = vpop.permute.xlu0 %40
    %vm42 = vcmask 7168
    %s43 = scalar_lea.vmem %s1, 6
    %44 = vst.msk [vmem:[%s43] ss:$8 sm:$0xf] %vm42, %v41
    %v45 = vld [vmem:[#allocation0] sm:$0xf]
    %46 = vrot.lane.b32.xlu0 %v45, 121
    %v47 = vpop.permute.xlu0 %46
    %vm48 = vcmask 7168
    %s49 = scalar_lea.vmem %s1, 7
    %50 = vst.msk [vmem:[%s49] ss:$8 sm:$0xf] %vm48, %v47

// kernel: tile.8
$region0: #{tile.8}
  #allocation0 [shape = 's32[1]{0}', space=sflag, size = 0x4, scoped, tag = 'scoped memory for tile.8']
  %s0 = inlined_call_operand.vmem [shape: f32[8], index: 0, kind: input, shape index: {}]
  %s1 = inlined_call_operand.vmem [shape: f32[4,8], index: 1, kind: output, shape index: {}]
  // Predicated region
  $region2: #{tile.8} parent=0 // pred_check
    _
  $region3: #{tile.8} parent=0 // pred_check_branch
    %3 = sbr.rel (0) target = $region5
  $region4: #{tile.8} parent=0 // pred_region
    _
  $region5: #{tile.8} parent=0 // pred_fallthru
    _
  %v4 = vld [vmem:[%s0] ss:$0 sm:$0xff]
  %5 = vst [vmem:[%s1] sm:$0xf] %v4

// kernel: upconv_forward.1
$region0: #{upconv_forward.1}
  #allocation0 [shape = 'u32[]', space=smem, size = 0x4, offset = 0x4, fixed_abs, tag = 'smem constant byte address 0x4 - core index']
  #allocation1 [shape = 'u32[144,128]{1,0:T(1,128)}', space=vmem, size = 0x12000, scoped, tag = 'internal scratch']
  #allocation2 [shape = 'bf16[36,512]{1,0:T(8,128)(2,1)}', space=vmem, size = 0xa000, scoped, tag = 'scratch operand']
  %s0 = inlined_call_operand.vmem [shape: bf16[3,2,4,288], index: 0, kind: input, shape index: {}]
  %s1 = inlined_call_operand.vmem [shape: bf16[32,36], index: 1, kind: input, shape index: {}]
  %s2 = inlined_call_operand.vmem [shape: f32[32,1], index: 2, kind: input, shape index: {}]
  %s3 = inlined_call_operand.vmem [shape: f32[2,32,256], index: 3, kind: output, shape index: {}]
  %s4 = sld [smem:[#allocation0]]
  $region22: #{upconv_forward.1} parent=0
    _
  %s6 = ssub.s32 1, %s4
  %s7 = scalar_select 0, %s6, %s4
  // Predicated region
  $region2: #{upconv_forward.1} parent=0 // pred_check
    _
  $region3: #{upconv_forward.1} parent=0 // pred_check_branch
    %9 = sbr.rel (0) target = $region5
  $region4: #{upconv_forward.1} parent=0 // pred_region
    _
  $region5: #{upconv_forward.1} parent=0 // pred_fallthru
    _
  // Predicated region
  $region6: #{upconv_forward.1} parent=0 // pred_check
    _
  $region7: #{upconv_forward.1} parent=0 // pred_check_branch
    %11 = sbr.rel (0) target = $region9
  $region8: #{upconv_forward.1} parent=0 // pred_region
    _
  $region9: #{upconv_forward.1} parent=0 // pred_fallthru
    _
  // Predicated region
  $region10: #{upconv_forward.1} parent=0 // pred_check
    _
  $region11: #{upconv_forward.1} parent=0 // pred_check_branch
    %13 = sbr.rel (0) target = $region13
  $region12: #{upconv_forward.1} parent=0 // pred_region
    _
  $region13: #{upconv_forward.1} parent=0 // pred_fallthru
    _
  %v15 = vld [vmem:[%s0] sm:$0xf]
  %v18 = vunpack.c.l.s4 1983009808
  %v19 = vunpack.c.0.s8 %v18
  %v20 = vlaneseq
  %v21 = vshrl.u32 %v20, 7
  %v22 = vsub.s32 %v19, %v21
  %v23 = vrot.slane %v15, %v22
  %25 = vst [vmem:[#allocation2] sm:$0x33] %v23
  %s26 = scalar_lea.vmem %s0, 6
  %v27 = vld [vmem:[%s26] sm:$0xf]
  %v30 = vunpack.c.l.s4 1983009808
  %v31 = vunpack.c.0.s8 %v30
  %v32 = vlaneseq
  %v33 = vshrl.u32 %v32, 7
  %v34 = vsub.s32 %v31, %v33
  %v35 = vrot.slane %v27, %v34
  %37 = vst [vmem:[#allocation2 + $0x8] sm:$0x33] %v35
  %s38 = scalar_lea.vmem %s0, 12
  %v39 = vld [vmem:[%s38] sm:$0xf]
  %v41 = vcombine.low %v39, %v39
  %v43 = vunpack.c.l.s4 1983009808
  %v44 = vunpack.c.0.s8 %v43
  %v45 = vlaneseq
  %v46 = vshrl.u32 %v45, 7
  %v47 = vsub.s32 %v44, %v46
  %v48 = vrot.slane %v41, %v47
  %50 = vst [vmem:[#allocation2] sm:$0xcc] %v48
  %s51 = scalar_lea.vmem %s0, 18
  %v52 = vld [vmem:[%s51] sm:$0xf]
  %v54 = vcombine.low %v52, %v52
  %v56 = vunpack.c.l.s4 1983009808
  %v57 = vunpack.c.0.s8 %v56
  %v58 = vlaneseq
  %v59 = vshrl.u32 %v58, 7
  %v60 = vsub.s32 %v57, %v59
  %v61 = vrot.slane %v54, %v60
  %63 = vst [vmem:[#allocation2 + $0x8] sm:$0xcc] %v61
  %s64 = scalar_lea.vmem %s0, 24
  %v65 = vld [vmem:[%s64] sm:$0xf]
  %v68 = vunpack.c.l.s4 1983009808
  %v69 = vunpack.c.0.s8 %v68
  %v70 = vlaneseq
  %v71 = vshrl.u32 %v70, 7
  %v72 = vsub.s32 %v69, %v71
  %v73 = vrot.slane %v65, %v72
  %75 = vst [vmem:[#allocation2 + $0x10] sm:$0x33] %v73
  %s76 = scalar_lea.vmem %s0, 30
  %v77 = vld [vmem:[%s76] sm:$0xf]
  %v80 = vunpack.c.l.s4 1983009808
  %v81 = vunpack.c.0.s8 %v80
  %v82 = vlaneseq
  %v83 = vshrl.u32 %v82, 7
  %v84 = vsub.s32 %v81, %v83
  %v85 = vrot.slane %v77, %v84
  %87 = vst [vmem:[#allocation2 + $0x18] sm:$0x33] %v85
  %v88 = vld [vmem:[%s0] sm:$0x3f]
  %v90 = vcombine.low %v88, %v88
  %v92 = vunpack.c.l.s4 1983009808
  %v93 = vunpack.c.0.s8 %v92
  %v94 = vlaneseq
  %v95 = vshrl.u32 %v94, 7
  %v96 = vsub.s32 %v93, %v95
  %v97 = vrot.slane %v90, %v96
  %v99 = vunpack.c.l.s4 1983009808
  %v100 = vunpack.c.0.s8 %v99
  %v101 = vlaneseq
  %v102 = vshrl.u32 %v101, 7
  %v103 = vsub.s32 %v100, %v102
  %v104 = vrot.slane %v88, %v103
  %105 = vrot.lane.b32.xlu0 %v97, 112
  %v106 = vpop.permute.xlu0 %105
  %107 = vrot.lane.b32.xlu0 %v104, 112
  %v108 = vpop.permute.xlu0 %107
  %v109 = vrot.slane %v106, 4
  %v110 = vrot.slane %v108, 4
  %vm111 = vcmask 1043456
  %v112 = vsel %vm111, %v109, %v110
  %vm113 = vcmask 916480
  %v114 = vsel %vm113, %v106, %v112
  %116 = vst [vmem:[#allocation2 + $0x10] sm:$0xcc] %v114
  %v117 = vld [vmem:[%s26] sm:$0x3f]
  %v119 = vcombine.low %v117, %v117
  %v121 = vunpack.c.l.s4 1983009808
  %v122 = vunpack.c.0.s8 %v121
  %v123 = vlaneseq
  %v124 = vshrl.u32 %v123, 7
  %v125 = vsub.s32 %v122, %v124
  %v126 = vrot.slane %v119, %v125
  %v128 = vunpack.c.l.s4 1983009808
  %v129 = vunpack.c.0.s8 %v128
  %v130 = vlaneseq
  %v131 = vshrl.u32 %v130, 7
  %v132 = vsub.s32 %v129, %v131
  %v133 = vrot.slane %v117, %v132
  %134 = vrot.lane.b32.xlu0 %v126, 112
  %v135 = vpop.permute.xlu0 %134
  %136 = vrot.lane.b32.xlu0 %v133, 112
  %v137 = vpop.permute.xlu0 %136
  %v138 = vrot.slane %v135, 4
  %v139 = vrot.slane %v137, 4
  %v140 = vsel %vm111, %v138, %v139
  %v141 = vsel %vm113, %v135, %v140
  %143 = vst [vmem:[#allocation2 + $0x18] sm:$0xcc] %v141
  %v144 = vld [vmem:[%s38] sm:$0x3f]
  %v146 = vcombine.high %v144, %v144
  %v148 = vunpack.c.l.s4 1983009808
  %v149 = vunpack.c.0.s8 %v148
  %v150 = vlaneseq
  %v151 = vshrl.u32 %v150, 7
  %v152 = vsub.s32 %v149, %v151
  %v153 = vrot.slane %v144, %v152
  %v155 = vunpack.c.l.s4 1983009808
  %v156 = vunpack.c.0.s8 %v155
  %v157 = vlaneseq
  %v158 = vshrl.u32 %v157, 7
  %v159 = vsub.s32 %v156, %v158
  %v160 = vrot.slane %v146, %v159
  %161 = vrot.lane.b32.xlu0 %v153, 112
  %v162 = vpop.permute.xlu0 %161
  %163 = vrot.lane.b32.xlu0 %v160, 112
  %v164 = vpop.permute.xlu0 %163
  %v165 = vrot.slane %v162, 4
  %v166 = vrot.slane %v164, 4
  %v167 = vsel %vm111, %v165, %v166
  %v168 = vsel %vm113, %v162, %v167
  %170 = vst [vmem:[#allocation2 + $0x20] sm:$0x33] %v168
  %v171 = vld [vmem:[%s51] sm:$0x3f]
  %v173 = vcombine.high %v171, %v171
  %v175 = vunpack.c.l.s4 1983009808
  %v176 = vunpack.c.0.s8 %v175
  %v177 = vlaneseq
  %v178 = vshrl.u32 %v177, 7
  %v179 = vsub.s32 %v176, %v178
  %v180 = vrot.slane %v171, %v179
  %v182 = vunpack.c.l.s4 1983009808
  %v183 = vunpack.c.0.s8 %v182
  %v184 = vlaneseq
  %v185 = vshrl.u32 %v184, 7
  %v186 = vsub.s32 %v183, %v185
  %v187 = vrot.slane %v173, %v186
  %188 = vrot.lane.b32.xlu0 %v180, 112
  %v189 = vpop.permute.xlu0 %188
  %190 = vrot.lane.b32.xlu0 %v187, 112
  %v191 = vpop.permute.xlu0 %190
  %v192 = vrot.slane %v189, 4
  %v193 = vrot.slane %v191, 4
  %v194 = vsel %vm111, %v192, %v193
  %v195 = vsel %vm113, %v189, %v194
  %197 = vst [vmem:[#allocation2 + $0x28] sm:$0x33] %v195
  %v198 = vld [vmem:[%s64] sm:$0x3f]
  %v200 = vcombine.low %v198, %v198
  %v202 = vunpack.c.l.s4 1983009808
  %v203 = vunpack.c.0.s8 %v202
  %v204 = vlaneseq
  %v205 = vshrl.u32 %v204, 7
  %v206 = vsub.s32 %v203, %v205
  %v207 = vrot.slane %v200, %v206
  %v209 = vunpack.c.l.s4 1983009808
  %v210 = vunpack.c.0.s8 %v209
  %v211 = vlaneseq
  %v212 = vshrl.u32 %v211, 7
  %v213 = vsub.s32 %v210, %v212
  %v214 = vrot.slane %v198, %v213
  %215 = vrot.lane.b32.xlu0 %v207, 112
  %v216 = vpop.permute.xlu0 %215
  %217 = vrot.lane.b32.xlu0 %v214, 112
  %v218 = vpop.permute.xlu0 %217
  %v219 = vrot.slane %v216, 4
  %v220 = vrot.slane %v218, 4
  %v221 = vsel %vm111, %v219, %v220
  %v222 = vsel %vm113, %v216, %v221
  %224 = vst [vmem:[#allocation2 + $0x20] sm:$0xcc] %v222
  %v225 = vld [vmem:[%s76] sm:$0x3f]
  %v227 = vcombine.low %v225, %v225
  %v229 = vunpack.c.l.s4 1983009808
  %v230 = vunpack.c.0.s8 %v229
  %v231 = vlaneseq
  %v232 = vshrl.u32 %v231, 7
  %v233 = vsub.s32 %v230, %v232
  %v234 = vrot.slane %v227, %v233
  %v236 = vunpack.c.l.s4 1983009808
  %v237 = vunpack.c.0.s8 %v236
  %v238 = vlaneseq
  %v239 = vshrl.u32 %v238, 7
  %v240 = vsub.s32 %v237, %v239
  %v241 = vrot.slane %v225, %v240
  %242 = vrot.lane.b32.xlu0 %v234, 112
  %v243 = vpop.permute.xlu0 %242
  %244 = vrot.lane.b32.xlu0 %v241, 112
  %v245 = vpop.permute.xlu0 %244
  %v246 = vrot.slane %v243, 4
  %v247 = vrot.slane %v245, 4
  %v248 = vsel %vm111, %v246, %v247
  %v249 = vsel %vm113, %v243, %v248
  %251 = vst [vmem:[#allocation2 + $0x28] sm:$0xcc] %v249
  %v252 = vld [vmem:[%s0] sm:$0x3f]
  %v254 = vcombine.high %v252, %v252
  %v256 = vunpack.c.l.s4 1983009808
  %v257 = vunpack.c.0.s8 %v256
  %v258 = vlaneseq
  %v259 = vshrl.u32 %v258, 7
  %v260 = vsub.s32 %v257, %v259
  %v261 = vrot.slane %v252, %v260
  %v263 = vunpack.c.l.s4 1983009808
  %v264 = vunpack.c.0.s8 %v263
  %v265 = vlaneseq
  %v266 = vshrl.u32 %v265, 7
  %v267 = vsub.s32 %v264, %v266
  %v268 = vrot.slane %v254, %v267
  %269 = vrot.lane.b32.xlu0 %v261, 96
  %v270 = vpop.permute.xlu0 %269
  %271 = vrot.lane.b32.xlu0 %v268, 96
  %v272 = vpop.permute.xlu0 %271
  %v273 = vrot.slane %v270, 4
  %v274 = vrot.slane %v272, 4
  %v275 = vsel %vm111, %v273, %v274
  %vm276 = vcmask 785408
  %v277 = vsel %vm276, %v270, %v275
  %279 = vst [vmem:[#allocation2 + $0x30] sm:$0x33] %v277
  %v280 = vld [vmem:[%s26] sm:$0x3f]
  %v282 = vcombine.high %v280, %v280
  %v284 = vunpack.c.l.s4 1983009808
  %v285 = vunpack.c.0.s8 %v284
  %v286 = vlaneseq
  %v287 = vshrl.u32 %v286, 7
  %v288 = vsub.s32 %v285, %v287
  %v289 = vrot.slane %v280, %v288
  %v291 = vunpack.c.l.s4 1983009808
  %v292 = vunpack.c.0.s8 %v291
  %v293 = vlaneseq
  %v294 = vshrl.u32 %v293, 7
  %v295 = vsub.s32 %v292, %v294
  %v296 = vrot.slane %v282, %v295
  %297 = vrot.lane.b32.xlu0 %v289, 96
  %v298 = vpop.permute.xlu0 %297
  %299 = vrot.lane.b32.xlu0 %v296, 96
  %v300 = vpop.permute.xlu0 %299
  %v301 = vrot.slane %v298, 4
  %v302 = vrot.slane %v300, 4
  %v303 = vsel %vm111, %v301, %v302
  %v304 = vsel %vm276, %v298, %v303
  %306 = vst [vmem:[#allocation2 + $0x38] sm:$0x33] %v304
  %v307 = vld [vmem:[%s38] sm:$0x3f]
  %v309 = vcombine.low %v307, %v307
  %v311 = vunpack.c.l.s4 1983009808
  %v312 = vunpack.c.0.s8 %v311
  %v313 = vlaneseq
  %v314 = vshrl.u32 %v313, 7
  %v315 = vsub.s32 %v312, %v314
  %v316 = vrot.slane %v309, %v315
  %v318 = vunpack.c.l.s4 1983009808
  %v319 = vunpack.c.0.s8 %v318
  %v320 = vlaneseq
  %v321 = vshrl.u32 %v320, 7
  %v322 = vsub.s32 %v319, %v321
  %v323 = vrot.slane %v307, %v322
  %324 = vrot.lane.b32.xlu0 %v316, 96
  %v325 = vpop.permute.xlu0 %324
  %326 = vrot.lane.b32.xlu0 %v323, 96
  %v327 = vpop.permute.xlu0 %326
  %v328 = vrot.slane %v325, 4
  %v329 = vrot.slane %v327, 4
  %v330 = vsel %vm111, %v328, %v329
  %v331 = vsel %vm276, %v325, %v330
  %333 = vst [vmem:[#allocation2 + $0x30] sm:$0xcc] %v331
  %v334 = vld [vmem:[%s51] sm:$0x3f]
  %v336 = vcombine.low %v334, %v334
  %v338 = vunpack.c.l.s4 1983009808
  %v339 = vunpack.c.0.s8 %v338
  %v340 = vlaneseq
  %v341 = vshrl.u32 %v340, 7
  %v342 = vsub.s32 %v339, %v341
  %v343 = vrot.slane %v336, %v342
  %v345 = vunpack.c.l.s4 1983009808
  %v346 = vunpack.c.0.s8 %v345
  %v347 = vlaneseq
  %v348 = vshrl.u32 %v347, 7
  %v349 = vsub.s32 %v346, %v348
  %v350 = vrot.slane %v334, %v349
  %351 = vrot.lane.b32.xlu0 %v343, 96
  %v352 = vpop.permute.xlu0 %351
  %353 = vrot.lane.b32.xlu0 %v350, 96
  %v354 = vpop.permute.xlu0 %353
  %v355 = vrot.slane %v352, 4
  %v356 = vrot.slane %v354, 4
  %v357 = vsel %vm111, %v355, %v356
  %v358 = vsel %vm276, %v352, %v357
  %360 = vst [vmem:[#allocation2 + $0x38] sm:$0xcc] %v358
  %v361 = vld [vmem:[%s64] sm:$0x3f]
  %v363 = vcombine.high %v361, %v361
  %v365 = vunpack.c.l.s4 1983009808
  %v366 = vunpack.c.0.s8 %v365
  %v367 = vlaneseq
  %v368 = vshrl.u32 %v367, 7
  %v369 = vsub.s32 %v366, %v368
  %v370 = vrot.slane %v361, %v369
  %v372 = vunpack.c.l.s4 1983009808
  %v373 = vunpack.c.0.s8 %v372
  %v374 = vlaneseq
  %v375 = vshrl.u32 %v374, 7
  %v376 = vsub.s32 %v373, %v375
  %v377 = vrot.slane %v363, %v376
  %378 = vrot.lane.b32.xlu0 %v370, 96
  %v379 = vpop.permute.xlu0 %378
  %380 = vrot.lane.b32.xlu0 %v377, 96
  %v381 = vpop.permute.xlu0 %380
  %v382 = vrot.slane %v379, 4
  %v383 = vrot.slane %v381, 4
  %v384 = vsel %vm111, %v382, %v383
  %v385 = vsel %vm276, %v379, %v384
  %387 = vst [vmem:[#allocation2 + $0x40] sm:$0x33] %v385
  %v388 = vld [vmem:[%s76] sm:$0x3f]
  %v390 = vcombine.high %v388, %v388
  %v392 = vunpack.c.l.s4 1983009808
  %v393 = vunpack.c.0.s8 %v392
  %v394 = vlaneseq
  %v395 = vshrl.u32 %v394, 7
  %v396 = vsub.s32 %v393, %v395
  %v397 = vrot.slane %v388, %v396
  %v399 = vunpack.c.l.s4 1983009808
  %v400 = vunpack.c.0.s8 %v399
  %v401 = vlaneseq
  %v402 = vshrl.u32 %v401, 7
  %v403 = vsub.s32 %v400, %v402
  %v404 = vrot.slane %v390, %v403
  %405 = vrot.lane.b32.xlu0 %v397, 96
  %v406 = vpop.permute.xlu0 %405
  %407 = vrot.lane.b32.xlu0 %v404, 96
  %v408 = vpop.permute.xlu0 %407
  %v409 = vrot.slane %v406, 4
  %v410 = vrot.slane %v408, 4
  %v411 = vsel %vm111, %v409, %v410
  %v412 = vsel %vm276, %v406, %v411
  %414 = vst [vmem:[#allocation2 + $0x48] sm:$0x33] %v412
  %v415 = vld [vmem:[%s1] sm:$0xf]
  %v416 = vld [vmem:[%s1 + $0x4] sm:$0xf]
  %v417 = vld [vmem:[%s1 + $0x8] sm:$0xf]
  %v418 = vld [vmem:[%s1 + $0xc] sm:$0xf]
  %v419 = vld [vmem:[#allocation2] sm:$0xff]
  %v420 = vld [vmem:[#allocation2 + $0x8] sm:$0xff]
  %v421 = vld [vmem:[#allocation2 + $0x10] sm:$0xff]
  %v422 = vld [vmem:[#allocation2 + $0x18] sm:$0xff]
  %v423 = vld [vmem:[#allocation2 + $0x20] sm:$0xff]
  %v424 = vld [vmem:[#allocation2 + $0x28] sm:$0xff]
  %v425 = vld [vmem:[#allocation2 + $0x30] sm:$0xff]
  %v426 = vld [vmem:[#allocation2 + $0x38] sm:$0xff]
  %v427 = vld [vmem:[#allocation2 + $0x40] sm:$0x33]
  %v428 = vld [vmem:[#allocation2 + $0x48] sm:$0x33]
  %v429 = vld [vmem:[%s2] sm:$0xff]
  %v430 = vld [vmem:[%s2 + $0x8] sm:$0xff]
  %v431 = vld [vmem:[%s2 + $0x10] sm:$0xff]
  %v432 = vld [vmem:[%s2 + $0x18] sm:$0xff]
  %434 = vset.pattern.permute.xlu0 0
  %435 = vperm.xlu0 %434, %v429
  %v436 = vpop.permute.xlu0 %435
  %439 = vset.pattern.permute.xlu0 0
  %440 = vperm.xlu0 %439, %v430
  %v441 = vpop.permute.xlu0 %440
  %444 = vset.pattern.permute.xlu0 0
  %445 = vperm.xlu0 %444, %v431
  %v446 = vpop.permute.xlu0 %445
  %449 = vset.pattern.permute.xlu0 0
  %450 = vperm.xlu0 %449, %v432
  %v451 = vpop.permute.xlu0 %450
  %v457 = vunpack.c.l.b16 %v415
  %v458 = vunpack.c.l.b16 %v416
  %v459 = vunpack.c.l.b16 %v417
  %v460 = vunpack.c.l.b16 %v418
  %v461 = vpack.c.b16 %v458, %v457
  %v462 = vpack.c.b16 %v460, %v459
  %v473 = vunpack.c.l.b16 %v419
  %v474 = vunpack.c.h.b16 %v419
  %v475 = vunpack.c.l.b16 %v420
  %v476 = vunpack.c.h.b16 %v420
  %v477 = vunpack.c.l.b16 %v421
  %v478 = vunpack.c.h.b16 %v421
  %v479 = vunpack.c.l.b16 %v422
  %v480 = vunpack.c.h.b16 %v422
  %v481 = vunpack.c.l.b16 %v423
  %v482 = vunpack.c.h.b16 %v423
  %v483 = vunpack.c.l.b16 %v424
  %v484 = vunpack.c.h.b16 %v424
  %v485 = vunpack.c.l.b16 %v425
  %v486 = vunpack.c.h.b16 %v425
  %v487 = vunpack.c.l.b16 %v426
  %v488 = vunpack.c.h.b16 %v426
  %v489 = vunpack.c.l.b16 %v427
  %v490 = vunpack.c.h.b16 %v427
  %v491 = vunpack.c.l.b16 %v428
  %v492 = vunpack.c.h.b16 %v428
  %v493 = vpack.c.b16 %v477, %v473
  %v494 = vpack.c.b16 %v478, %v474
  %v495 = vpack.c.b16 %v479, %v475
  %v496 = vpack.c.b16 %v480, %v476
  %v497 = vpack.c.b16 %v485, %v481
  %v498 = vpack.c.b16 %v486, %v482
  %v499 = vpack.c.b16 %v487, %v483
  %v500 = vpack.c.b16 %v488, %v484
  %v501 = vpack.c.b16 %v489, %v489
  %v502 = vpack.c.b16 %v490, %v490
  %v503 = vpack.c.b16 %v491, %v491
  %v504 = vpack.c.b16 %v492, %v492
  %vm513 = vcmask 293888
  %v515 = vsel %vm513, %v461, 0
  %v518 = vsel %vm513, %v462, 0
  %vm520 = vcmask 1041408
  %v522 = vsel %vm520, %v501, 0
  %v525 = vsel %vm520, %v502, 0
  %v528 = vsel %vm520, %v503, 0
  %v531 = vsel %vm520, %v504, 0
  %533 = vmatprep.subr.bf16.mxu0 %v494
  %534 = vmatpush1.bf16.msra.mxu0 %v493
  %535 = vmatprep.subr.bf16.mxu0 %v498
  %536 = vmatpush1.bf16.msra.mxu0 %v497
  %537 = vmatprep.subr.bf16.mxu0 %v525
  %538 = vmatpush1.bf16.msra.mxu0 %v522
  %539 = vmatprep.subr.bf16.mxu0 0
  %540 = vmatpush1.bf16.msra.mxu0 0
  %541 = vmatprep.subr.bf16.mxu0 0
  %542 = vmatpush1.bf16.msra.mxu0 0
  %543 = vmatprep.subr.bf16.mxu0 0
  %544 = vmatpush1.bf16.msra.mxu0 0
  %545 = vmatprep.subr.bf16.mxu0 0
  %546 = vmatpush1.bf16.msra.mxu0 0
  %547 = vmatprep.subr.bf16.mxu0 0
  %548 = vmatpush1.bf16.msra.mxu0 0
  %549 = vmatprep.subr.bf16.mxu0 0
  %550 = vmatpush1.bf16.msra.mxu0 0
  %551 = vmatprep.subr.bf16.mxu0 0
  %552 = vmatpush1.bf16.msra.mxu0 0
  %553 = vmatprep.subr.bf16.mxu0 0
  %554 = vmatpush1.bf16.msra.mxu0 0
  %555 = vmatprep.subr.bf16.mxu0 0
  %556 = vmatpush1.bf16.msra.mxu0 0
  %557 = vmatprep.subr.bf16.mxu0 0
  %558 = vmatpush1.bf16.msra.mxu0 0
  %559 = vmatprep.subr.bf16.mxu0 0
  %560 = vmatpush1.bf16.msra.mxu0 0
  %561 = vmatprep.subr.bf16.mxu0 0
  %562 = vmatpush1.bf16.msra.mxu0 0
  %563 = vmatprep.subr.bf16.mxu0 0
  %564 = vmatpush1.bf16.msra.mxu0 0
  %565 = vmatprep.mubr.bf16.mxu0 0
  %566 = vmatmul.mubr.bf16.gmra.mrb[0].mxu0 %v515
  %v567 = vpop.f32.mrb[0].mxu0
  %v568 = vadd.f32 %v436, %v567
  %v569 = vpop.f32.mrb[0].mxu0
  %v570 = vadd.f32 %v436, %v569
  %v571 = vpop.f32.mrb[0].mxu0
  %v572 = vadd.f32 %v441, %v571
  %v573 = vpop.f32.mrb[0].mxu0
  %v574 = vadd.f32 %v441, %v573
  %575 = vmatprep.mubr.bf16.mxu0 0
  %576 = vmatmul.mubr.bf16.gmra.mrb[0].mxu0 %v518
  %v577 = vpop.f32.mrb[0].mxu0
  %v578 = vadd.f32 %v446, %v577
  %v579 = vpop.f32.mrb[0].mxu0
  %v580 = vadd.f32 %v446, %v579
  %v581 = vpop.f32.mrb[0].mxu0
  %v582 = vadd.f32 %v451, %v581
  %v583 = vpop.f32.mrb[0].mxu0
  %v584 = vadd.f32 %v451, %v583
  %585 = vdwg.mxu0
  %586 = vmatprep.subr.bf16.mxu0 %v496
  %587 = vmatpush1.bf16.msra.mxu0 %v495
  %588 = vmatprep.subr.bf16.mxu0 %v500
  %589 = vmatpush1.bf16.msra.mxu0 %v499
  %590 = vmatprep.subr.bf16.mxu0 %v531
  %591 = vmatpush1.bf16.msra.mxu0 %v528
  %592 = vmatprep.subr.bf16.mxu0 0
  %593 = vmatpush1.bf16.msra.mxu0 0
  %594 = vmatprep.subr.bf16.mxu0 0
  %595 = vmatpush1.bf16.msra.mxu0 0
  %596 = vmatprep.subr.bf16.mxu0 0
  %597 = vmatpush1.bf16.msra.mxu0 0
  %598 = vmatprep.subr.bf16.mxu0 0
  %599 = vmatpush1.bf16.msra.mxu0 0
  %600 = vmatprep.subr.bf16.mxu0 0
  %601 = vmatpush1.bf16.msra.mxu0 0
  %602 = vmatprep.subr.bf16.mxu0 0
  %603 = vmatpush1.bf16.msra.mxu0 0
  %604 = vmatprep.subr.bf16.mxu0 0
  %605 = vmatpush1.bf16.msra.mxu0 0
  %606 = vmatprep.subr.bf16.mxu0 0
  %607 = vmatpush1.bf16.msra.mxu0 0
  %608 = vmatprep.subr.bf16.mxu0 0
  %609 = vmatpush1.bf16.msra.mxu0 0
  %610 = vmatprep.subr.bf16.mxu0 0
  %611 = vmatpush1.bf16.msra.mxu0 0
  %612 = vmatprep.subr.bf16.mxu0 0
  %613 = vmatpush1.bf16.msra.mxu0 0
  %614 = vmatprep.subr.bf16.mxu0 0
  %615 = vmatpush1.bf16.msra.mxu0 0
  %616 = vmatprep.subr.bf16.mxu0 0
  %617 = vmatpush1.bf16.msra.mxu0 0
  %618 = vmatprep.mubr.bf16.mxu0 0
  %619 = vmatmul.mubr.bf16.gmra.mrb[0].mxu0 %v515
  %v620 = vpop.f32.mrb[0].mxu0
  %v621 = vadd.f32 %v436, %v620
  %v622 = vpop.f32.mrb[0].mxu0
  %v623 = vadd.f32 %v436, %v622
  %v624 = vpop.f32.mrb[0].mxu0
  %v625 = vadd.f32 %v441, %v624
  %v626 = vpop.f32.mrb[0].mxu0
  %v627 = vadd.f32 %v441, %v626
  %628 = vmatprep.mubr.bf16.mxu0 0
  %629 = vmatmul.mubr.bf16.gmra.mrb[0].mxu0 %v518
  %v630 = vpop.f32.mrb[0].mxu0
  %v631 = vadd.f32 %v446, %v630
  %v632 = vpop.f32.mrb[0].mxu0
  %v633 = vadd.f32 %v446, %v632
  %v634 = vpop.f32.mrb[0].mxu0
  %v635 = vadd.f32 %v451, %v634
  %v636 = vpop.f32.mrb[0].mxu0
  %v637 = vadd.f32 %v451, %v636
  %638 = vdwg.mxu0
  %639 = vst [vmem:[%s3] sm:$0xff] %v568
  %640 = vst [vmem:[%s3 + $0x8] sm:$0xff] %v570
  %641 = vst [vmem:[%s3 + $0x10] sm:$0xff] %v572
  %642 = vst [vmem:[%s3 + $0x18] sm:$0xff] %v574
  %643 = vst [vmem:[%s3 + $0x20] sm:$0xff] %v578
  %644 = vst [vmem:[%s3 + $0x28] sm:$0xff] %v580
  %645 = vst [vmem:[%s3 + $0x30] sm:$0xff] %v582
  %646 = vst [vmem:[%s3 + $0x38] sm:$0xff] %v584
  %s647 = scalar_lea.vmem %s3, 64
  %648 = vst [vmem:[%s647] sm:$0xff] %v621
  %649 = vst [vmem:[%s647 + $0x8] sm:$0xff] %v623
  %650 = vst [vmem:[%s647 + $0x10] sm:$0xff] %v625
  %651 = vst [vmem:[%s647 + $0x18] sm:$0xff] %v627
  %652 = vst [vmem:[%s647 + $0x20] sm:$0xff] %v631
  %653 = vst [vmem:[%s647 + $0x28] sm:$0xff] %v633
  %654 = vst [vmem:[%s647 + $0x30] sm:$0xff] %v635
  %655 = vst [vmem:[%s647 + $0x38] sm:$0xff] %v637
  // Predicated region
  $region14: #{upconv_forward.1} parent=0 // pred_check
    _
  $region15: #{upconv_forward.1} parent=0 // pred_check_branch
    %657 = sbr.rel (0) target = $region17
  $region16: #{upconv_forward.1} parent=0 // pred_region
    _
  $region17: #{upconv_forward.1} parent=0 // pred_fallthru
    _
  // Predicated region
  $region18: #{upconv_forward.1} parent=0 // pred_check
    _
  $region19: #{upconv_forward.1} parent=0 // pred_check_branch
    %659 = sbr.rel (0) target = $region21
  $region20: #{upconv_forward.1} parent=0 // pred_region
    _
  $region21: #{upconv_forward.1} parent=0 // pred_fallthru
    _

</llo_original>
